<compile_context>
chip_gen: v7x
topology: tpu7x:2x2x1
jax: 0.10.0
libtpu: 0.0.40
codegen_flags: <defaults>
</compile_context>

<pallas_src>
import jax
import jax.numpy as jnp
from jax.experimental import pallas as pl
from jax.experimental.pallas import tpu as pltpu


def lower_level_kernel(y_ref, x_ref, o_ref):
    # y_ref: (1, N) native dtype, x_ref: (B, N) native dtype, o_ref: (B, 1) f32.
    y = y_ref[...].astype(jnp.float32)                        # (1, N)
    x = x_ref[...].astype(jnp.float32)                        # (B, N)
    ynorm = jnp.sqrt(jnp.sum(y * y, axis=-1, keepdims=True))  # (1, 1)  VPU mul + XLU reduce
    dots = jnp.sum(x * y, axis=-1, keepdims=True)             # (B, 1)  broadcast mul + XLU reduce
    o_ref[...] = ynorm - dots                                 # (B, 1)


@jax.jit
def lower_level_forward(x, y):
    """Pallas implementation of lower_level.forward.

    x: (B, N) (module uses B=1), y: (1, N) (nn.Parameter).
    Returns (B, 1) float32:  ||y||_2 - x @ y.T
    (spectral norm of a (1, N) matrix == its vector 2-norm).
    """
    b, n = x.shape
    return pl.pallas_call(
        lower_level_kernel,
        out_shape=jax.ShapeDtypeStruct((b, 1), jnp.float32),
        in_specs=[
            pl.BlockSpec(memory_space=pltpu.MemorySpace.VMEM),  # y, full array
            pl.BlockSpec(memory_space=pltpu.MemorySpace.VMEM),  # x, full array
        ],
        out_specs=pl.BlockSpec(memory_space=pltpu.MemorySpace.VMEM),
        cost_estimate=pl.CostEstimate(
            flops=4 * n * b,
            transcendentals=1,
            bytes_accessed=4 * ((1 + b) * n + b),
        ),
    )(y, x)


if __name__ == "__main__":
    key = jax.random.PRNGKey(0)
    kx, ky, kz = jax.random.split(key, 3)

    N = 100
    # Deterministic "parameters" / inputs (uniform [0,1), like torch.rand).
    x = jax.random.uniform(kx, (1, N), dtype=jnp.float32)
    y = jax.random.uniform(ky, (1, N), dtype=jnp.float32)   # nn.Parameter y
    z = jax.random.uniform(kz, (1, N), dtype=jnp.float32)   # nn.Parameter z (unused in forward)

    out = lower_level_forward(x, y)
    out = jax.block_until_ready(out)

    # Pure-JAX reference check (f32 tolerances).
    ref = jnp.sqrt(jnp.sum(y * y)) - x @ y.T
    assert out.shape == (1, 1), out.shape
    assert jnp.allclose(out, ref, rtol=1e-5, atol=1e-5), (out, ref)

    print("KERNEL_OK")
</pallas_src>

<mosaic_0001>
module attributes {stable_mosaic.version = 11 : i64} {
  func.func @lower_level_kernel(%arg0: memref<1x100xf32, #tpu.memory_space<vmem>>, %arg1: memref<1x100xf32, #tpu.memory_space<vmem>>, %arg2: memref<1x1xf32, #tpu.memory_space<vmem>>) attributes {dimension_semantics = [], scalar_prefetch = 0 : i64, scratch_operands = 0 : i64, tpu.core_type = #tpu.core_type<tc>} {
    %c0 = arith.constant 0 : index
    %c0_0 = arith.constant 0 : index
    %0 = vector.load %arg0[%c0, %c0_0] : memref<1x100xf32, #tpu.memory_space<vmem>>, vector<1x100xf32>
    %c0_1 = arith.constant 0 : index
    %c0_2 = arith.constant 0 : index
    %1 = vector.load %arg1[%c0_1, %c0_2] : memref<1x100xf32, #tpu.memory_space<vmem>>, vector<1x100xf32>
    %2 = arith.mulf %0, %0 : vector<1x100xf32>
    %cst = arith.constant dense<0.000000e+00> : vector<1xf32>
    %3 = vector.multi_reduction <add>, %2, %cst [1] : vector<1x100xf32> to vector<1xf32>
    %4 = vector.shape_cast %3 : vector<1xf32> to vector<1x1xf32>
    %5 = math.sqrt %4 : vector<1x1xf32>
    %6 = arith.mulf %1, %0 : vector<1x100xf32>
    %cst_3 = arith.constant dense<0.000000e+00> : vector<1xf32>
    %7 = vector.multi_reduction <add>, %6, %cst_3 [1] : vector<1x100xf32> to vector<1xf32>
    %8 = vector.shape_cast %7 : vector<1xf32> to vector<1x1xf32>
    %9 = arith.subf %5, %8 : vector<1x1xf32>
    %c0_4 = arith.constant 0 : index
    %c0_5 = arith.constant 0 : index
    %10 = vector.load %arg2[%c0_4, %c0_5] : memref<1x1xf32, #tpu.memory_space<vmem>>, vector<1x1xf32>
    tpu.vector_store %arg2[%c0_4, %c0_5], %9 {strides = array<i32>} : memref<1x1xf32, #tpu.memory_space<vmem>>, vector<1x1xf32>,
    return
  }
}

</mosaic_0001>

<llo_original>
// kernel: lower_level_forward.1
$region0: #{lower_level_forward.1}
  #allocation0 [shape = 'u32[]', space=smem, size = 0x4, offset = 0x4, fixed_abs, tag = 'smem constant byte address 0x4 - core index']
  #allocation1 [shape = 'u32[144,128]{1,0:T(1,128)}', space=vmem, size = 0x12000, scoped, tag = 'internal scratch']
  %s0 = inlined_call_operand.vmem [shape: f32[1,100], index: 0, kind: input, shape index: {}]
  %s1 = inlined_call_operand.hbm [shape: f32[1,100], index: 1, kind: input, shape index: {}]
  %s2 = inlined_call_operand.hbm [shape: f32[1,1], index: 2, kind: output, shape index: {}]
  %s3 = sld [smem:[#allocation0]]
  $region22: #{lower_level_forward.1} parent=0
    _
  %s5 = ssub.s32 1, %s3
  %s6 = scalar_select 0, %s5, %s3
  $region1: #{lower_level_forward.1} parent=0
    #allocation2 [shape = 'u8[512]{0}', space=vmem, size = 0x400, scoped, tag = 'input window, operand 1, single buffered']
    #allocation3 [shape = 's32[1]{0}', space=sflag, size = 0x4, scoped, tag = 'scoped memory for lower_level_forward.1']
    #allocation4 [shape = 's32[1]{0}', space=sflag, size = 0x4, scoped, tag = 'scoped memory for lower_level_forward.1']
    #allocation5 [shape = 'u8[512]{0}', space=vmem, size = 0x400, scoped, tag = 'output window, operand 0, single buffered']
    %7 = vsyncpa [#allocation3], 0
    %8 = vsyncpa [#allocation4], 0
    // Predicated region
    $region2: #{lower_level_forward.1} parent=1 // pred_check
      _
    $region3: #{lower_level_forward.1} parent=1 // pred_check_branch
      %10 = sbr.rel (0) target = $region5
    $region4: #{lower_level_forward.1} parent=1 // pred_region
      _
    $region5: #{lower_level_forward.1} parent=1 // pred_fallthru
      _
    // Predicated region
    $region6: #{lower_level_forward.1} parent=1 // pred_check
      _
    $region7: #{lower_level_forward.1} parent=1 // pred_check_branch
      %12 = sbr.rel (0) target = $region9
    $region8: #{lower_level_forward.1} parent=1 // pred_region
      %s14 = ssub.s32 16, 16
      %15 = vsyncadd [#allocation3], %s14
      %s17 = sshll.u32 [#allocation2], 4
      %s18 = int_to_ptr.vmem [resolvable:$true] %s17
      %20 = dma.hbm_to_vmem [thread:$0]  %s1, 16, %s18, [#allocation3]
    $region9: #{lower_level_forward.1} parent=1 // pred_fallthru
      _
    // Predicated region
    $region10: #{lower_level_forward.1} parent=1 // pred_check
      _
    $region11: #{lower_level_forward.1} parent=1 // pred_check_branch
      %22 = sbr.rel (0) target = $region13
    $region12: #{lower_level_forward.1} parent=1 // pred_region
      %23 = dma.done [#allocation3], 16
    $region13: #{lower_level_forward.1} parent=1 // pred_fallthru
      _
    %v24 = vld [vmem:[%s0] sm:$0x1]
    %v25 = vld [vmem:[#allocation2] sm:$0x1]
    %v26 = vmul.f32 %v24, %v24
    %vm27 = vcmask 811008
    %v28 = vsel %vm27, %v26, 0.0
    %29 = vadd.xlane.f32.xlu0 %v28
    %v30 = vpop.xlane.xlu0 %29
    %v31 = vrsqrt.pop %v30
    %v32 = vmul.f32 %v30, %v31
    %vm33 = vcmp.eq.f32.partialorder %v30, inf
    %v34 = vsel %vm33, %v30, %v32
    %vm35 = vcmp.eq.f32.partialorder %v30, 0.0
    %v36 = vand.u32 %v30, 2147483648
    %v37 = vsel %vm35, %v36, %v34
    %v38 = vmul.f32 %v25, %v24
    %v39 = vsel %vm27, %v38, 0.0
    %40 = vadd.xlane.f32.xlu0 %v39
    %v41 = vpop.xlane.xlu0 %40
    %v42 = vsub.f32 %v37, %v41
    %vm43 = vcmask 0
    %44 = vst.msk [vmem:[#allocation5] sm:$0x1] %vm43, %v42
    // Predicated region
    $region14: #{lower_level_forward.1} parent=1 // pred_check
      _
    $region15: #{lower_level_forward.1} parent=1 // pred_check_branch
      %46 = sbr.rel (0) target = $region17
    $region16: #{lower_level_forward.1} parent=1 // pred_region
      %s48 = ssub.s32 16, 16
      %49 = vsyncadd [#allocation4], %s48
      %s51 = sshll.u32 [#allocation5], 4
      %s52 = int_to_ptr.vmem [resolvable:$true] %s51
      %54 = dma.vmem_to_hbm [thread:$0]  %s52, 16, %s2, [#allocation4]
    $region17: #{lower_level_forward.1} parent=1 // pred_fallthru
      _
    // Predicated region
    $region18: #{lower_level_forward.1} parent=1 // pred_check
      _
    $region19: #{lower_level_forward.1} parent=1 // pred_check_branch
      %56 = sbr.rel (0) target = $region21
    $region20: #{lower_level_forward.1} parent=1 // pred_region
      %57 = dma.done [#allocation4], 16
    $region21: #{lower_level_forward.1} parent=1 // pred_fallthru
      _
    %58 = vsyncpa [#allocation3], 1
    %59 = vsyncpa [#allocation4], 1

</llo_original>
